<compile_context>
chip_gen: v7x
topology: tpu7x:2x2x1
jax: 0.10.0
libtpu: 0.0.40
codegen_flags: <defaults>
</compile_context>

<pallas_src>
import jax
import jax.numpy as jnp
from jax.experimental import pallas as pl
from jax.experimental.pallas import tpu as pltpu


def _copy_kernel(img_ref, out_ref):
    # Grid step (h, i): store row-tile `h` of the input into replica i's slab.
    out_ref[...] = img_ref[...]


def _sublane_multiple(dtype) -> int:
    # Native sublane tiling: 8 rows for 32-bit, 16 for 16-bit, 32 for 8-bit.
    itemsize = jnp.dtype(dtype).itemsize
    return max(8, 8 * (4 // max(itemsize, 1)))


def _round_up(x: int, m: int) -> int:
    return ((x + m - 1) // m) * m


def _choose_lane_width(total: int, itemsize: int, max_lane_bytes: int = 16 * 1024):
    """Largest L with L % 128 == 0, total % L == 0, L*itemsize <= max_lane_bytes.
    Returns None iff no multiple of 128 divides `total` (-> XLA fallback)."""
    if total % 128 != 0:
        return None
    best = 128
    max_l = max(128, (max_lane_bytes // itemsize) // 128 * 128)
    lane = 128
    while lane <= min(total, max_l):
        if total % lane == 0:
            best = lane
        lane += 128
    return best


def _choose_tile_rows(rows, lane, itemsize, sub, target_bytes=4 * 1024 * 1024):
    """Row-tile: multiple of `sub`, ~target_bytes, and >= 2 blocks when possible."""
    row_bytes = lane * itemsize
    tr = max(sub, (target_bytes // row_bytes) // sub * sub)
    tr = min(tr, _round_up(rows, sub))          # never bigger than one pass
    # Keep >= 2 row-blocks so v7x can split the "parallel" row axis across its
    # two TensorCores (p stays serial to preserve the input-DMA reuse).
    while pl.cdiv(rows, tr) < 2 and tr > sub:
        tr = max(sub, (tr // 2) // sub * sub)
    return tr


def _pallas_replicate(img2d, p, tile_rows):
    rows, lane = img2d.shape
    itemsize = jnp.dtype(img2d.dtype).itemsize
    n_rb = pl.cdiv(rows, tile_rows)
    return pl.pallas_call(
        _copy_kernel,
        out_shape=jax.ShapeDtypeStruct((p, rows, lane), img2d.dtype),
        grid_spec=pltpu.PrefetchScalarGridSpec(
            num_scalar_prefetch=0,
            # p innermost: input block index is independent of it, so the
            # input HBM->VMEM DMA is issued once per row-tile, stored p times.
            grid=(n_rb, p),
            in_specs=[pl.BlockSpec((tile_rows, lane), lambda h, i: (h, 0))],
            # Replica i is plane i of the (p, rows, L) output; boundary row
            # blocks are masked per replica (no divisibility requirement).
            out_specs=pl.BlockSpec((None, tile_rows, lane), lambda h, i: (i, h, 0)),
        ),
        compiler_params=pltpu.CompilerParams(
            # Keep p serial ("arbitrary") so consecutive iterations reuse the
            # resident input tile; shard only the row axis across cores.
            dimension_semantics=("parallel", "arbitrary"),
            vmem_limit_bytes=48 * 1024 * 1024,
        ),
        cost_estimate=pl.CostEstimate(
            flops=0,
            transcendentals=0,
            bytes_accessed=(1 + p) * rows * lane * itemsize,
        ),
    )(img2d)


def horizontal_stack(img: jax.Array, p: int = 2) -> jax.Array:
    """Replicate `img` p times along axis 0 (np.vstack semantics)."""
    if p <= 1:
        return img
    if img.ndim == 1:
        img = img.reshape(1, -1)            # np.vstack promotes 1-D to (1, N)

    H = img.shape[0]
    rest = img.shape[1:]
    total = H
    for d in rest:
        total *= d
    itemsize = jnp.dtype(img.dtype).itemsize
    out_shape = (p * H,) + rest
    out_bytes = p * total * itemsize

    lane = _choose_lane_width(total, itemsize)
    # < ~1 MiB of output: pallas_call launch + per-step overhead loses to
    # XLA's fused concatenate; same for element counts not divisible by 128.
    if lane is None or out_bytes < (1 << 20):
        return jnp.concatenate([img] * p, axis=0)

    # NOTE: if `img` is non-contiguous (e.g. comes from a transpose), this
    # reshape costs one extra XLA copy before the kernel; still correct.
    img2d = img.reshape(total // lane, lane)
    sub = _sublane_multiple(img.dtype)
    tile_rows = _choose_tile_rows(total // lane, lane, itemsize, sub)
    out3d = _pallas_replicate(img2d, p, tile_rows)
    return out3d.reshape(out_shape)


# TODO(synk): `Image.fromarray(...)` (PIL image-object construction) has no
# Pallas/JAX equivalent; the kernel returns the stacked array instead.


if __name__ == "__main__":
    key_u8, key_f32 = jax.random.split(jax.random.PRNGKey(0))

    # --- uint8 "PIL-style" image, p = 2: exercises the Pallas path ----------
    p = 2
    H, W, C = 480, 640, 3            # 900 KiB input -> 1.8 MiB output (>1 MiB)
    img_u8 = jax.random.randint(key_u8, (H, W, C), 0, 256, dtype=jnp.int32)
    img_u8 = img_u8.astype(jnp.uint8)
    assert _choose_lane_width(H * W * C, 1) is not None  # Pallas path taken

    out_u8 = jax.block_until_ready(horizontal_stack(img_u8, p=p))
    ref_u8 = jnp.concatenate([img_u8] * p, axis=0)
    assert out_u8.shape == (p * H, W, C), out_u8.shape
    assert out_u8.dtype == img_u8.dtype, out_u8.dtype
    assert bool(jnp.array_equal(out_u8, ref_u8)), "uint8 mismatch vs vstack ref"

    # --- float32 image, p = 3: Pallas path, input-DMA reuse across replicas -
    p3 = 3
    Hf, Wf, Cf = 256, 320, 3
    img_f32 = jax.random.uniform(key_f32, (Hf, Wf, Cf), dtype=jnp.float32) * 255.0
    out_f32 = jax.block_until_ready(horizontal_stack(img_f32, p=p3))
    ref_f32 = jnp.concatenate([img_f32] * p3, axis=0)
    assert out_f32.shape == (p3 * Hf, Wf, Cf), out_f32.shape
    assert out_f32.dtype == img_f32.dtype, out_f32.dtype
    assert bool(jnp.array_equal(out_f32, ref_f32)), "f32 mismatch vs vstack ref"

    # --- tiny image: overhead-dominated -> XLA concatenate fallback ---------
    img_small = jax.random.randint(key_u8, (8, 16, 3), 0, 256, dtype=jnp.int32)
    img_small = img_small.astype(jnp.uint8)
    out_small = jax.block_until_ready(horizontal_stack(img_small, p=2))
    ref_small = jnp.concatenate([img_small] * 2, axis=0)
    assert bool(jnp.array_equal(out_small, ref_small)), "small-image mismatch"

    print("KERNEL_OK")
</pallas_src>

<mosaic_0001>
module attributes {stable_mosaic.version = 11 : i64} {
  func.func @_copy_kernel(%arg0: i32, %arg1: i32, %arg2: memref<32x15360xi8, #tpu.memory_space<vmem>>, %arg3: memref<1x32x15360xi8, #tpu.memory_space<vmem>>) attributes {dimension_semantics = [#tpu.dimension_semantics<parallel>, #tpu.dimension_semantics<arbitrary>], iteration_bounds = array<i64: 2, 2>, scalar_prefetch = 0 : i64, scratch_operands = 0 : i64, tpu.core_type = #tpu.core_type<tc>, window_params = [{transform_indices = @transform_0, window_bounds = array<i64: 32, 15360>}, {transform_indices = @transform_1, window_bounds = array<i64: 1, 32, 15360>}]} {
    %c0 = arith.constant 0 : index
    %c0_0 = arith.constant 0 : index
    %0 = vector.load %arg2[%c0, %c0_0] : memref<32x15360xi8, #tpu.memory_space<vmem>>, vector<32x15360xi8>
    %c0_1 = arith.constant 0 : index
    %c0_2 = arith.constant 0 : index
    %c0_3 = arith.constant 0 : index
    %1 = vector.load %arg3[%c0_1, %c0_2, %c0_3] : memref<1x32x15360xi8, #tpu.memory_space<vmem>>, vector<1x32x15360xi8>
    %2 = vector.shape_cast %1 : vector<1x32x15360xi8> to vector<32x15360xi8>
    %3 = vector.shape_cast %0 : vector<32x15360xi8> to vector<1x32x15360xi8>
    tpu.vector_store %arg3[%c0_1, %c0_2, %c0_3], %3 {strides = array<i32>} : memref<1x32x15360xi8, #tpu.memory_space<vmem>>, vector<1x32x15360xi8>,
    return
  }
  func.func @transform_0(%arg0: i32, %arg1: i32) -> (i32, i32) {
    %c0_i32 = arith.constant 0 : i32
    %c0_i32_0 = arith.constant 0 : i32
    return %arg0, %c0_i32 : i32, i32
  }
  func.func @transform_1(%arg0: i32, %arg1: i32) -> (i32, i32, i32) {
    %c0_i32 = arith.constant 0 : i32
    %c0_i32_0 = arith.constant 0 : i32
    return %arg1, %arg0, %c0_i32 : i32, i32, i32
  }
}

</mosaic_0001>

<llo_original>
// kernel: tpu_custom_call.1
$region0: #{tpu_custom_call.1}
  #allocation0 [shape = 'u32[]', space=smem, size = 0x4, offset = 0x4, fixed_abs, tag = 'smem constant byte address 0x4 - core index']
  #allocation1 [shape = 'u32[144,128]{1,0:T(1,128)}', space=vmem, size = 0x12000, scoped, tag = 'internal scratch']
  %s0 = inlined_call_operand.hbm [shape: u8[60,15360], index: 0, kind: input, shape index: {}]
  %s1 = inlined_call_operand.hbm [shape: u8[2,60,15360], index: 1, kind: output, shape index: {}]
  %s2 = sld [smem:[#allocation0]]
  $region41: #{tpu_custom_call.1} parent=0
    _
  %s4 = ssub.s32 1, %s2
  %s5 = scalar_select 0, %s4, %s2
  $region1: #{tpu_custom_call.1} parent=0
    #allocation2 [shape = 'u8[983040]{0}', space=vmem, size = 0xf0000, scoped, tag = 'input window, operand 0']
    #allocation3 [shape = 's32[2]{0}', space=sflag, size = 0x8, scoped, tag = 'scoped memory for tpu_custom_call.1']
    #allocation4 [shape = 's32[2]{0}', space=sflag, size = 0x8, scoped, tag = 'scoped memory for tpu_custom_call.1']
    #allocation5 [shape = 'u8[983040]{0}', space=vmem, size = 0xf0000, scoped, tag = 'output window, operand 0']
    %6 = vsyncpa [#allocation3], 0
    %s7 = scalar_lea.sflag [#allocation3], 1
    %8 = vsyncpa %s7, 0
    %9 = vsyncpa [#allocation4], 0
    %s10 = scalar_lea.sflag [#allocation4], 1
    %11 = vsyncpa %s10, 0
    loop: start=0, step=1, limit=6
    $region2: #{tpu_custom_call.1} parent=1 // loop_pre_header
      _
    $region3: #{tpu_custom_call.1} parent=1 // loop_header
      %s13 = sphi 0, %s17
      %p14 = scmp.ge.s32.totalorder %s13, 6
      %s20 = sphi 0, %s32
      %s21 = sphi 0, %s28
      %s22 = sphi 0, %s20
      %s23 = sphi 0, %s21
      %s24 = sphi 0, %s22
      %s25 = sphi 0, %s23
      %s35 = sphi 0, %s37
      %s38 = sphi 0, %s35
      %s39 = sphi 0, %s38
      %s55 = sphi 0, %s39
      %s63 = sphi 0, %s65
      %s66 = sphi 0, %s63
      %s67 = sphi 0, %s66
      %s83 = sphi 0, %s67
    $region4: #{tpu_custom_call.1} parent=1 // loop_header_branch
      %16 = sbr.rel (%p14) target = $region8
    $region5: #{tpu_custom_call.1} parent=1 // loop_body
      %s18 = ssub.s32 %s13, 1
      %s19 = ssub.s32 %s13, 2
      %s26 = sadd.s32 1, %s21
      %p27 = scmp.ge.s32.totalorder %s26, 2
      %s28 = scalar_select %p27, 0, %s26
      %s29 = sadd.s32 1, %s20
      %s30 = scalar_select %p27, %s29, %s20
      %p31 = scmp.ge.s32.totalorder %s30, 2
      %s32 = scalar_select %p31, 0, %s30
      %s33 = ssub.s32 %s20, %s32
      %p34 = scmp.eq.s32.totalorder %s33, 0
      %s36 = sadd.s32 %s35, 1
      %s37 = scalar_select %p34, %s35, %s36
      %p40 = pneg %p34
      %p41 = scmp.eq.s32.totalorder %s13, 3
      %p42 = por %p40, %p41
      %p43 = scmp.ne.s32.totalorder %s35, %s38
      %p44 = scmp.eq.s32.totalorder %s13, 0
      %p45 = por %p43, %p44
      %p46 = scmp.ne.s32.totalorder %s35, %s38
      %p47 = scmp.eq.s32.totalorder %s18, 3
      %p48 = por %p46, %p47
      %p49 = scmp.ne.s32.totalorder %s38, %s39
      %p50 = scmp.eq.s32.totalorder %s18, 0
      %p51 = por %p49, %p50
      %p52 = scmp.ne.s32.totalorder %s38, %s39
      %p53 = scmp.eq.s32.totalorder %s19, 3
      %p54 = por %p52, %p53
      %p56 = scmp.ne.s32.totalorder %s39, %s55
      %p57 = scmp.eq.s32.totalorder %s19, 0
      %p58 = por %p56, %p57
      %s59 = ssub.s32 %s21, %s28
      %s60 = ssub.s32 %s20, %s32
      %s61 = sor.u32 %s59, %s60
      %p62 = scmp.eq.s32.totalorder %s61, 0
      %s64 = sadd.s32 %s63, 1
      %s65 = scalar_select %p62, %s63, %s64
      %p68 = pneg %p62
      %p69 = scmp.eq.s32.totalorder %s13, 3
      %p70 = por %p68, %p69
      %p71 = scmp.ne.s32.totalorder %s63, %s66
      %p72 = scmp.eq.s32.totalorder %s13, 0
      %p73 = por %p71, %p72
      %p74 = scmp.ne.s32.totalorder %s63, %s66
      %p75 = scmp.eq.s32.totalorder %s18, 3
      %p76 = por %p74, %p75
      %p77 = scmp.ne.s32.totalorder %s66, %s67
      %p78 = scmp.eq.s32.totalorder %s18, 0
      %p79 = por %p77, %p78
      %p80 = scmp.ne.s32.totalorder %s66, %s67
      %p81 = scmp.eq.s32.totalorder %s19, 3
      %p82 = por %p80, %p81
      %p84 = scmp.ne.s32.totalorder %s67, %s83
      %p85 = scmp.eq.s32.totalorder %s19, 0
      %p86 = por %p84, %p85
      %p87 = scmp.le.s32.totalorder 1, %s13
      %p88 = scmp.lt.s32.totalorder %s13, 5
      %p89 = pnand %p87, %p88
      %p90 = pneg %p89
      // Predicated region
      $region9: #{tpu_custom_call.1} parent=5 // pred_check
        _
      $region10: #{tpu_custom_call.1} parent=5 // pred_check_branch
        %92 = sbr.rel (%p89) target = $region12
      $region11: #{tpu_custom_call.1} parent=5 // pred_region
        %s93 = ssub.s32 %s13, 1
      $region12: #{tpu_custom_call.1} parent=5 // pred_fallthru
        _
      %p94 = scmp.lt.s32.totalorder %s13, 4
      // Predicated region
      $region13: #{tpu_custom_call.1} parent=5 // pred_check
        %p95 = pneg %p94
      $region14: #{tpu_custom_call.1} parent=5 // pred_check_branch
        %97 = sbr.rel (%p95) target = $region16
      $region15: #{tpu_custom_call.1} parent=5 // pred_region
        // Predicated region
        $region17: #{tpu_custom_call.1} parent=15 // pred_check
          %p98 = pneg %p45
        $region18: #{tpu_custom_call.1} parent=15 // pred_check_branch
          %100 = sbr.rel (%p98) target = $region20
        $region19: #{tpu_custom_call.1} parent=15 // pred_region
          %s101 = sand.u32 %s35, 1
          %s102 = scalar_lea.sflag [#allocation3], %s101
          %s103 = sand.u32 %s35, 1
          %s104 = smul.addr %s103, 960
          %s105 = scalar_lea.vmem [#allocation2], %s104
          %s106 = smul.u32 4, %s20
          %s108 = ssub.s32 15360, 15360
          %109 = vsyncadd %s102, %s108
          %s110 = smul.addr %s106, 120
          %s111 = smul.addr %s110, 32
          %s112 = scalar_lea.hbm %s0, %s111
          %s113 = sshll.u32 %s105, 4
          %s114 = int_to_ptr.vmem [resolvable:$true] %s113
          %119 = dma.hbm_to_vmem [thread:$0]  %s112, 15360, %s114, %s102, 3840, 3840, 240
        $region20: #{tpu_custom_call.1} parent=15 // pred_fallthru
          _
      $region16: #{tpu_custom_call.1} parent=5 // pred_fallthru
        _
      %p120 = scmp.le.s32.totalorder 1, %s13
      %p121 = scmp.lt.s32.totalorder %s13, 5
      %p122 = pnand %p120, %p121
      %p123 = pneg %p122
      // Predicated region
      $region21: #{tpu_custom_call.1} parent=5 // pred_check
        _
      $region22: #{tpu_custom_call.1} parent=5 // pred_check_branch
        %125 = sbr.rel (%p122) target = $region24
      $region23: #{tpu_custom_call.1} parent=5 // pred_region
        %s126 = ssub.s32 %s13, 1
        %s127 = sand.u32 %s38, 1
        %s128 = scalar_lea.sflag [#allocation3], %s127
        %s129 = sand.u32 %s38, 1
        %s130 = smul.addr %s129, 960
        %s131 = scalar_lea.vmem [#allocation2], %s130
        // Predicated region
        $region25: #{tpu_custom_call.1} parent=23 // pred_check
          %p132 = pneg %p51
        $region26: #{tpu_custom_call.1} parent=23 // pred_check_branch
          %134 = sbr.rel (%p132) target = $region28
        $region27: #{tpu_custom_call.1} parent=23 // pred_region
          %135 = dma.done %s128, 15360
        $region28: #{tpu_custom_call.1} parent=23 // pred_fallthru
          _
        %s136 = sand.u32 %s38, 1
        %s137 = scalar_lea.sflag [#allocation3], %s136
        %s138 = sand.u32 %s38, 1
        %s139 = smul.addr %s138, 960
        %s140 = scalar_lea.vmem [#allocation2], %s139
        %p141 = pneg %p51
        %p142 = pneg %p48
        %p143 = pneg %p79
        %p144 = pneg %p76
        %s145 = sand.u32 %s66, 1
        %s146 = scalar_lea.sflag [#allocation4], %s145
        %s147 = sand.u32 %s66, 1
        %s148 = smul.addr %s147, 960
        %s149 = scalar_lea.vmem [#allocation5], %s148
        %s150 = smul.u32 4, %s22
        %s151 = smul.u32 4, %s22
        %v152 = vld [vmem:[%s131] sm:$0xff]
        %v153 = vld [vmem:[%s131 + $0x8] sm:$0xff]
        %v154 = vld [vmem:[%s131 + $0x10] sm:$0xff]
        %v155 = vld [vmem:[%s131 + $0x18] sm:$0xff]
        %v156 = vld [vmem:[%s131 + $0x20] sm:$0xff]
        %v157 = vld [vmem:[%s131 + $0x28] sm:$0xff]
        %v158 = vld [vmem:[%s131 + $0x30] sm:$0xff]
        %v159 = vld [vmem:[%s131 + $0x38] sm:$0xff]
        %v160 = vld [vmem:[%s131 + $0x40] sm:$0xff]
        %v161 = vld [vmem:[%s131 + $0x48] sm:$0xff]
        %v162 = vld [vmem:[%s131 + $0x50] sm:$0xff]
        %v163 = vld [vmem:[%s131 + $0x58] sm:$0xff]
        %v164 = vld [vmem:[%s131 + $0x60] sm:$0xff]
        %v165 = vld [vmem:[%s131 + $0x68] sm:$0xff]
        %v166 = vld [vmem:[%s131 + $0x70] sm:$0xff]
        %v167 = vld [vmem:[%s131 + $0x78] sm:$0xff]
        %v168 = vld [vmem:[%s131 + $0x80] sm:$0xff]
        %v169 = vld [vmem:[%s131 + $0x88] sm:$0xff]
        %v170 = vld [vmem:[%s131 + $0x90] sm:$0xff]
        %v171 = vld [vmem:[%s131 + $0x98] sm:$0xff]
        %v172 = vld [vmem:[%s131 + $0xa0] sm:$0xff]
        %v173 = vld [vmem:[%s131 + $0xa8] sm:$0xff]
        %v174 = vld [vmem:[%s131 + $0xb0] sm:$0xff]
        %v175 = vld [vmem:[%s131 + $0xb8] sm:$0xff]
        %v176 = vld [vmem:[%s131 + $0xc0] sm:$0xff]
        %v177 = vld [vmem:[%s131 + $0xc8] sm:$0xff]
        %v178 = vld [vmem:[%s131 + $0xd0] sm:$0xff]
        %v179 = vld [vmem:[%s131 + $0xd8] sm:$0xff]
        %v180 = vld [vmem:[%s131 + $0xe0] sm:$0xff]
        %v181 = vld [vmem:[%s131 + $0xe8] sm:$0xff]
        %v182 = vld [vmem:[%s131 + $0xf0] sm:$0xff]
        %v183 = vld [vmem:[%s131 + $0xf8] sm:$0xff]
        %v184 = vld [vmem:[%s131 + $0x100] sm:$0xff]
        %v185 = vld [vmem:[%s131 + $0x108] sm:$0xff]
        %v186 = vld [vmem:[%s131 + $0x110] sm:$0xff]
        %v187 = vld [vmem:[%s131 + $0x118] sm:$0xff]
        %v188 = vld [vmem:[%s131 + $0x120] sm:$0xff]
        %v189 = vld [vmem:[%s131 + $0x128] sm:$0xff]
        %v190 = vld [vmem:[%s131 + $0x130] sm:$0xff]
        %v191 = vld [vmem:[%s131 + $0x138] sm:$0xff]
        %v192 = vld [vmem:[%s131 + $0x140] sm:$0xff]
        %v193 = vld [vmem:[%s131 + $0x148] sm:$0xff]
        %v194 = vld [vmem:[%s131 + $0x150] sm:$0xff]
        %v195 = vld [vmem:[%s131 + $0x158] sm:$0xff]
        %v196 = vld [vmem:[%s131 + $0x160] sm:$0xff]
        %v197 = vld [vmem:[%s131 + $0x168] sm:$0xff]
        %v198 = vld [vmem:[%s131 + $0x170] sm:$0xff]
        %v199 = vld [vmem:[%s131 + $0x178] sm:$0xff]
        %v200 = vld [vmem:[%s131 + $0x180] sm:$0xff]
        %v201 = vld [vmem:[%s131 + $0x188] sm:$0xff]
        %v202 = vld [vmem:[%s131 + $0x190] sm:$0xff]
        %v203 = vld [vmem:[%s131 + $0x198] sm:$0xff]
        %v204 = vld [vmem:[%s131 + $0x1a0] sm:$0xff]
        %v205 = vld [vmem:[%s131 + $0x1a8] sm:$0xff]
        %v206 = vld [vmem:[%s131 + $0x1b0] sm:$0xff]
        %v207 = vld [vmem:[%s131 + $0x1b8] sm:$0xff]
        %v208 = vld [vmem:[%s131 + $0x1c0] sm:$0xff]
        %v209 = vld [vmem:[%s131 + $0x1c8] sm:$0xff]
        %v210 = vld [vmem:[%s131 + $0x1d0] sm:$0xff]
        %v211 = vld [vmem:[%s131 + $0x1d8] sm:$0xff]
        %v212 = vld [vmem:[%s131 + $0x1e0] sm:$0xff]
        %v213 = vld [vmem:[%s131 + $0x1e8] sm:$0xff]
        %v214 = vld [vmem:[%s131 + $0x1f0] sm:$0xff]
        %v215 = vld [vmem:[%s131 + $0x1f8] sm:$0xff]
        %v216 = vld [vmem:[%s131 + $0x200] sm:$0xff]
        %v217 = vld [vmem:[%s131 + $0x208] sm:$0xff]
        %v218 = vld [vmem:[%s131 + $0x210] sm:$0xff]
        %v219 = vld [vmem:[%s131 + $0x218] sm:$0xff]
        %v220 = vld [vmem:[%s131 + $0x220] sm:$0xff]
        %v221 = vld [vmem:[%s131 + $0x228] sm:$0xff]
        %v222 = vld [vmem:[%s131 + $0x230] sm:$0xff]
        %v223 = vld [vmem:[%s131 + $0x238] sm:$0xff]
        %v224 = vld [vmem:[%s131 + $0x240] sm:$0xff]
        %v225 = vld [vmem:[%s131 + $0x248] sm:$0xff]
        %v226 = vld [vmem:[%s131 + $0x250] sm:$0xff]
        %v227 = vld [vmem:[%s131 + $0x258] sm:$0xff]
        %v228 = vld [vmem:[%s131 + $0x260] sm:$0xff]
        %v229 = vld [vmem:[%s131 + $0x268] sm:$0xff]
        %v230 = vld [vmem:[%s131 + $0x270] sm:$0xff]
        %v231 = vld [vmem:[%s131 + $0x278] sm:$0xff]
        %v232 = vld [vmem:[%s131 + $0x280] sm:$0xff]
        %v233 = vld [vmem:[%s131 + $0x288] sm:$0xff]
        %v234 = vld [vmem:[%s131 + $0x290] sm:$0xff]
        %v235 = vld [vmem:[%s131 + $0x298] sm:$0xff]
        %v236 = vld [vmem:[%s131 + $0x2a0] sm:$0xff]
        %v237 = vld [vmem:[%s131 + $0x2a8] sm:$0xff]
        %v238 = vld [vmem:[%s131 + $0x2b0] sm:$0xff]
        %v239 = vld [vmem:[%s131 + $0x2b8] sm:$0xff]
        %v240 = vld [vmem:[%s131 + $0x2c0] sm:$0xff]
        %v241 = vld [vmem:[%s131 + $0x2c8] sm:$0xff]
        %v242 = vld [vmem:[%s131 + $0x2d0] sm:$0xff]
        %v243 = vld [vmem:[%s131 + $0x2d8] sm:$0xff]
        %v244 = vld [vmem:[%s131 + $0x2e0] sm:$0xff]
        %v245 = vld [vmem:[%s131 + $0x2e8] sm:$0xff]
        %v246 = vld [vmem:[%s131 + $0x2f0] sm:$0xff]
        %v247 = vld [vmem:[%s131 + $0x2f8] sm:$0xff]
        %v248 = vld [vmem:[%s131 + $0x300] sm:$0xff]
        %v249 = vld [vmem:[%s131 + $0x308] sm:$0xff]
        %v250 = vld [vmem:[%s131 + $0x310] sm:$0xff]
        %v251 = vld [vmem:[%s131 + $0x318] sm:$0xff]
        %v252 = vld [vmem:[%s131 + $0x320] sm:$0xff]
        %v253 = vld [vmem:[%s131 + $0x328] sm:$0xff]
        %v254 = vld [vmem:[%s131 + $0x330] sm:$0xff]
        %v255 = vld [vmem:[%s131 + $0x338] sm:$0xff]
        %v256 = vld [vmem:[%s131 + $0x340] sm:$0xff]
        %v257 = vld [vmem:[%s131 + $0x348] sm:$0xff]
        %v258 = vld [vmem:[%s131 + $0x350] sm:$0xff]
        %v259 = vld [vmem:[%s131 + $0x358] sm:$0xff]
        %v260 = vld [vmem:[%s131 + $0x360] sm:$0xff]
        %v261 = vld [vmem:[%s131 + $0x368] sm:$0xff]
        %v262 = vld [vmem:[%s131 + $0x370] sm:$0xff]
        %v263 = vld [vmem:[%s131 + $0x378] sm:$0xff]
        %v264 = vld [vmem:[%s131 + $0x380] sm:$0xff]
        %v265 = vld [vmem:[%s131 + $0x388] sm:$0xff]
        %v266 = vld [vmem:[%s131 + $0x390] sm:$0xff]
        %v267 = vld [vmem:[%s131 + $0x398] sm:$0xff]
        %v268 = vld [vmem:[%s131 + $0x3a0] sm:$0xff]
        %v269 = vld [vmem:[%s131 + $0x3a8] sm:$0xff]
        %v270 = vld [vmem:[%s131 + $0x3b0] sm:$0xff]
        %v271 = vld [vmem:[%s131 + $0x3b8] sm:$0xff]
        %272 = vst [vmem:[%s149] sm:$0xff] %v152
        %273 = vst [vmem:[%s149 + $0x8] sm:$0xff] %v153
        %274 = vst [vmem:[%s149 + $0x10] sm:$0xff] %v154
        %275 = vst [vmem:[%s149 + $0x18] sm:$0xff] %v155
        %276 = vst [vmem:[%s149 + $0x20] sm:$0xff] %v156
        %277 = vst [vmem:[%s149 + $0x28] sm:$0xff] %v157
        %278 = vst [vmem:[%s149 + $0x30] sm:$0xff] %v158
        %279 = vst [vmem:[%s149 + $0x38] sm:$0xff] %v159
        %280 = vst [vmem:[%s149 + $0x40] sm:$0xff] %v160
        %281 = vst [vmem:[%s149 + $0x48] sm:$0xff] %v161
        %282 = vst [vmem:[%s149 + $0x50] sm:$0xff] %v162
        %283 = vst [vmem:[%s149 + $0x58] sm:$0xff] %v163
        %284 = vst [vmem:[%s149 + $0x60] sm:$0xff] %v164
        %285 = vst [vmem:[%s149 + $0x68] sm:$0xff] %v165
        %286 = vst [vmem:[%s149 + $0x70] sm:$0xff] %v166
        %287 = vst [vmem:[%s149 + $0x78] sm:$0xff] %v167
        %288 = vst [vmem:[%s149 + $0x80] sm:$0xff] %v168
        %289 = vst [vmem:[%s149 + $0x88] sm:$0xff] %v169
        %290 = vst [vmem:[%s149 + $0x90] sm:$0xff] %v170
        %291 = vst [vmem:[%s149 + $0x98] sm:$0xff] %v171
        %292 = vst [vmem:[%s149 + $0xa0] sm:$0xff] %v172
        %293 = vst [vmem:[%s149 + $0xa8] sm:$0xff] %v173
        %294 = vst [vmem:[%s149 + $0xb0] sm:$0xff] %v174
        %295 = vst [vmem:[%s149 + $0xb8] sm:$0xff] %v175
        %296 = vst [vmem:[%s149 + $0xc0] sm:$0xff] %v176
        %297 = vst [vmem:[%s149 + $0xc8] sm:$0xff] %v177
        %298 = vst [vmem:[%s149 + $0xd0] sm:$0xff] %v178
        %299 = vst [vmem:[%s149 + $0xd8] sm:$0xff] %v179
        %300 = vst [vmem:[%s149 + $0xe0] sm:$0xff] %v180
        %301 = vst [vmem:[%s149 + $0xe8] sm:$0xff] %v181
        %302 = vst [vmem:[%s149 + $0xf0] sm:$0xff] %v182
        %303 = vst [vmem:[%s149 + $0xf8] sm:$0xff] %v183
        %304 = vst [vmem:[%s149 + $0x100] sm:$0xff] %v184
        %305 = vst [vmem:[%s149 + $0x108] sm:$0xff] %v185
        %306 = vst [vmem:[%s149 + $0x110] sm:$0xff] %v186
        %307 = vst [vmem:[%s149 + $0x118] sm:$0xff] %v187
        %308 = vst [vmem:[%s149 + $0x120] sm:$0xff] %v188
        %309 = vst [vmem:[%s149 + $0x128] sm:$0xff] %v189
        %310 = vst [vmem:[%s149 + $0x130] sm:$0xff] %v190
        %311 = vst [vmem:[%s149 + $0x138] sm:$0xff] %v191
        %312 = vst [vmem:[%s149 + $0x140] sm:$0xff] %v192
        %313 = vst [vmem:[%s149 + $0x148] sm:$0xff] %v193
        %314 = vst [vmem:[%s149 + $0x150] sm:$0xff] %v194
        %315 = vst [vmem:[%s149 + $0x158] sm:$0xff] %v195
        %316 = vst [vmem:[%s149 + $0x160] sm:$0xff] %v196
        %317 = vst [vmem:[%s149 + $0x168] sm:$0xff] %v197
        %318 = vst [vmem:[%s149 + $0x170] sm:$0xff] %v198
        %319 = vst [vmem:[%s149 + $0x178] sm:$0xff] %v199
        %320 = vst [vmem:[%s149 + $0x180] sm:$0xff] %v200
        %321 = vst [vmem:[%s149 + $0x188] sm:$0xff] %v201
        %322 = vst [vmem:[%s149 + $0x190] sm:$0xff] %v202
        %323 = vst [vmem:[%s149 + $0x198] sm:$0xff] %v203
        %324 = vst [vmem:[%s149 + $0x1a0] sm:$0xff] %v204
        %325 = vst [vmem:[%s149 + $0x1a8] sm:$0xff] %v205
        %326 = vst [vmem:[%s149 + $0x1b0] sm:$0xff] %v206
        %327 = vst [vmem:[%s149 + $0x1b8] sm:$0xff] %v207
        %328 = vst [vmem:[%s149 + $0x1c0] sm:$0xff] %v208
        %329 = vst [vmem:[%s149 + $0x1c8] sm:$0xff] %v209
        %330 = vst [vmem:[%s149 + $0x1d0] sm:$0xff] %v210
        %331 = vst [vmem:[%s149 + $0x1d8] sm:$0xff] %v211
        %332 = vst [vmem:[%s149 + $0x1e0] sm:$0xff] %v212
        %333 = vst [vmem:[%s149 + $0x1e8] sm:$0xff] %v213
        %334 = vst [vmem:[%s149 + $0x1f0] sm:$0xff] %v214
        %335 = vst [vmem:[%s149 + $0x1f8] sm:$0xff] %v215
        %336 = vst [vmem:[%s149 + $0x200] sm:$0xff] %v216
        %337 = vst [vmem:[%s149 + $0x208] sm:$0xff] %v217
        %338 = vst [vmem:[%s149 + $0x210] sm:$0xff] %v218
        %339 = vst [vmem:[%s149 + $0x218] sm:$0xff] %v219
        %340 = vst [vmem:[%s149 + $0x220] sm:$0xff] %v220
        %341 = vst [vmem:[%s149 + $0x228] sm:$0xff] %v221
        %342 = vst [vmem:[%s149 + $0x230] sm:$0xff] %v222
        %343 = vst [vmem:[%s149 + $0x238] sm:$0xff] %v223
        %344 = vst [vmem:[%s149 + $0x240] sm:$0xff] %v224
        %345 = vst [vmem:[%s149 + $0x248] sm:$0xff] %v225
        %346 = vst [vmem:[%s149 + $0x250] sm:$0xff] %v226
        %347 = vst [vmem:[%s149 + $0x258] sm:$0xff] %v227
        %348 = vst [vmem:[%s149 + $0x260] sm:$0xff] %v228
        %349 = vst [vmem:[%s149 + $0x268] sm:$0xff] %v229
        %350 = vst [vmem:[%s149 + $0x270] sm:$0xff] %v230
        %351 = vst [vmem:[%s149 + $0x278] sm:$0xff] %v231
        %352 = vst [vmem:[%s149 + $0x280] sm:$0xff] %v232
        %353 = vst [vmem:[%s149 + $0x288] sm:$0xff] %v233
        %354 = vst [vmem:[%s149 + $0x290] sm:$0xff] %v234
        %355 = vst [vmem:[%s149 + $0x298] sm:$0xff] %v235
        %356 = vst [vmem:[%s149 + $0x2a0] sm:$0xff] %v236
        %357 = vst [vmem:[%s149 + $0x2a8] sm:$0xff] %v237
        %358 = vst [vmem:[%s149 + $0x2b0] sm:$0xff] %v238
        %359 = vst [vmem:[%s149 + $0x2b8] sm:$0xff] %v239
        %360 = vst [vmem:[%s149 + $0x2c0] sm:$0xff] %v240
        %361 = vst [vmem:[%s149 + $0x2c8] sm:$0xff] %v241
        %362 = vst [vmem:[%s149 + $0x2d0] sm:$0xff] %v242
        %363 = vst [vmem:[%s149 + $0x2d8] sm:$0xff] %v243
        %364 = vst [vmem:[%s149 + $0x2e0] sm:$0xff] %v244
        %365 = vst [vmem:[%s149 + $0x2e8] sm:$0xff] %v245
        %366 = vst [vmem:[%s149 + $0x2f0] sm:$0xff] %v246
        %367 = vst [vmem:[%s149 + $0x2f8] sm:$0xff] %v247
        %368 = vst [vmem:[%s149 + $0x300] sm:$0xff] %v248
        %369 = vst [vmem:[%s149 + $0x308] sm:$0xff] %v249
        %370 = vst [vmem:[%s149 + $0x310] sm:$0xff] %v250
        %371 = vst [vmem:[%s149 + $0x318] sm:$0xff] %v251
        %372 = vst [vmem:[%s149 + $0x320] sm:$0xff] %v252
        %373 = vst [vmem:[%s149 + $0x328] sm:$0xff] %v253
        %374 = vst [vmem:[%s149 + $0x330] sm:$0xff] %v254
        %375 = vst [vmem:[%s149 + $0x338] sm:$0xff] %v255
        %376 = vst [vmem:[%s149 + $0x340] sm:$0xff] %v256
        %377 = vst [vmem:[%s149 + $0x348] sm:$0xff] %v257
        %378 = vst [vmem:[%s149 + $0x350] sm:$0xff] %v258
        %379 = vst [vmem:[%s149 + $0x358] sm:$0xff] %v259
        %380 = vst [vmem:[%s149 + $0x360] sm:$0xff] %v260
        %381 = vst [vmem:[%s149 + $0x368] sm:$0xff] %v261
        %382 = vst [vmem:[%s149 + $0x370] sm:$0xff] %v262
        %383 = vst [vmem:[%s149 + $0x378] sm:$0xff] %v263
        %384 = vst [vmem:[%s149 + $0x380] sm:$0xff] %v264
        %385 = vst [vmem:[%s149 + $0x388] sm:$0xff] %v265
        %386 = vst [vmem:[%s149 + $0x390] sm:$0xff] %v266
        %387 = vst [vmem:[%s149 + $0x398] sm:$0xff] %v267
        %388 = vst [vmem:[%s149 + $0x3a0] sm:$0xff] %v268
        %389 = vst [vmem:[%s149 + $0x3a8] sm:$0xff] %v269
        %390 = vst [vmem:[%s149 + $0x3b0] sm:$0xff] %v270
        %391 = vst [vmem:[%s149 + $0x3b8] sm:$0xff] %v271
        %s392 = sand.u32 %s66, 1
        %s393 = scalar_lea.sflag [#allocation4], %s392
        %s394 = sand.u32 %s66, 1
        %s395 = smul.addr %s394, 960
        %s396 = scalar_lea.vmem [#allocation5], %s395
        // Predicated region
        $region29: #{tpu_custom_call.1} parent=23 // pred_check
          %p397 = pneg %p76
        $region30: #{tpu_custom_call.1} parent=23 // pred_check_branch
          %399 = sbr.rel (%p397) target = $region32
        $region31: #{tpu_custom_call.1} parent=23 // pred_region
          %s400 = smul.u32 4, %s22
          %s402 = ssub.s32 15360, 15360
          %403 = vsyncadd %s393, %s402
          %s404 = smul.addr %s400, 120
          %s405 = smul.addr %s23, 960
          %s406 = sadd.s32 %s404, %s405
          %s407 = smul.addr %s406, 32
          %s408 = scalar_lea.hbm %s1, %s407
          %s409 = sshll.u32 %s396, 4
          %s410 = int_to_ptr.vmem [resolvable:$true] %s409
          %415 = dma.vmem_to_hbm [thread:$0]  %s410, 15360, %s408, %s393, 3840, 3840, 240
        $region32: #{tpu_custom_call.1} parent=23 // pred_fallthru
          _
      $region24: #{tpu_custom_call.1} parent=5 // pred_fallthru
        _
      %p416 = scmp.le.s32.totalorder 2, %s13
      // Predicated region
      $region33: #{tpu_custom_call.1} parent=5 // pred_check
        %p417 = pneg %p416
      $region34: #{tpu_custom_call.1} parent=5 // pred_check_branch
        %419 = sbr.rel (%p417) target = $region36
      $region35: #{tpu_custom_call.1} parent=5 // pred_region
        %s420 = ssub.s32 %s13, 2
        // Predicated region
        $region37: #{tpu_custom_call.1} parent=35 // pred_check
          %p421 = pneg %p82
        $region38: #{tpu_custom_call.1} parent=35 // pred_check_branch
          %423 = sbr.rel (%p421) target = $region40
        $region39: #{tpu_custom_call.1} parent=35 // pred_region
          %s424 = sand.u32 %s67, 1
          %s425 = scalar_lea.sflag [#allocation4], %s424
          %s426 = sand.u32 %s67, 1
          %s427 = smul.addr %s426, 960
          %s428 = scalar_lea.vmem [#allocation5], %s427
          %429 = dma.done %s425, 15360
        $region40: #{tpu_custom_call.1} parent=35 // pred_fallthru
          _
      $region36: #{tpu_custom_call.1} parent=5 // pred_fallthru
        _
    $region6: #{tpu_custom_call.1} parent=1 // loop_footer
      %s17 = sadd.s32 1, %s13
    $region7: #{tpu_custom_call.1} parent=1 // loop_footer_branch
      %12 = sbr.rel target = $region3
    $region8: #{tpu_custom_call.1} parent=1 // loop_exit
      _
    %430 = vsyncpa [#allocation3], 1
    %s431 = scalar_lea.sflag [#allocation3], 1
    %432 = vsyncpa %s431, 1
    %433 = vsyncpa [#allocation4], 1
    %s434 = scalar_lea.sflag [#allocation4], 1
    %435 = vsyncpa %s434, 1

</llo_original>
